<compile_context>
chip_gen: v5e
topology: v5e:2x2
jax: 0.10.0
libtpu: 0.0.40
codegen_flags: <defaults>
</compile_context>

<pallas_src>
import functools

import jax
import jax.numpy as jnp
from jax import lax
from jax.experimental import pallas as pl
from jax.experimental.pallas import tpu as pltpu


def _round_up(n, m):
    return ((n + m - 1) // m) * m


def mlp_kernel(x_ref,
               w1_ref, b1_ref,
               w2_ref, b2_ref,
               w3_ref, b3_ref,
               w4_ref, b4_ref,
               o_ref, *, chunk, n_chunks, compute_dtype):
    # Biases are tiny and f32 (they add onto the f32 MXU accumulator); load
    # once per grid step.  Weights are read inside the chunk body straight from
    # their VMEM refs (cheap vld, hidden under the MXU) to keep vreg pressure
    # low across the unrolled body.
    b1 = b1_ref[...]
    b2 = b2_ref[...]
    b3 = b3_ref[...]
    b4 = b4_ref[...]

    def one_chunk(r):
        # In-kernel cast to the MXU compute dtype (no wrapper-side HBM pass).
        xb = x_ref[pl.ds(r, chunk), :].astype(compute_dtype)

        # fc1 (+ folded BN1) -> ReLU ; Dropout(0.6) is identity in eval mode.
        h = jnp.dot(xb, w1_ref[...], preferred_element_type=jnp.float32) + b1
        h = jnp.maximum(h, 0.0).astype(compute_dtype)

        # fc2 (+ folded BN2) -> ReLU
        h = jnp.dot(h, w2_ref[...], preferred_element_type=jnp.float32) + b2
        h = jnp.maximum(h, 0.0).astype(compute_dtype)

        # fc3 (+ folded BN3) -> ReLU
        h = jnp.dot(h, w3_ref[...], preferred_element_type=jnp.float32) + b3
        h = jnp.maximum(h, 0.0).astype(compute_dtype)

        # out: block-diagonal (16p -> p), one logit per packed sample.
        y = jnp.dot(h, w4_ref[...], preferred_element_type=jnp.float32) + b4
        o_ref[pl.ds(r, chunk), :] = y.astype(o_ref.dtype)

    # <=8 chunks: fully unrolled.  More: manually 8x-unrolled body inside a
    # short loop, so the LLO scheduler always sees a large straight-line body.
    unroll = n_chunks if n_chunks <= 8 else 8
    n_outer = n_chunks // unroll          # exact by wrapper construction

    def body(o, carry):
        base = o * (unroll * chunk)
        for u in range(unroll):
            one_chunk(pl.multiple_of(base + u * chunk, chunk))
        return carry

    lax.fori_loop(0, n_outer, body, 0, unroll=(n_outer == 1))


def fold_bn_into_linear(w, b, gamma, beta, rmean, rvar, eps=1e-5):
    """BN(x @ w + b) == x @ (w * scale) + ((b - rmean) * scale + beta)."""
    scale = gamma * lax.rsqrt(rvar + eps)        # (1, dout)
    return w * scale, (b - rmean) * scale + beta


def _block_diag(w, p):
    """blockdiag(w, ..., w) with p copies; keeps packed samples independent."""
    din, dout = w.shape
    out = jnp.zeros((p * din, p * dout), w.dtype)
    for i in range(p):
        out = out.at[i * din:(i + 1) * din, i * dout:(i + 1) * dout].set(w)
    return out


def mlp_forward(x, params, *, pack=4, block_rows=2048, chunk_rows=64,
                compute_dtype=jnp.bfloat16):
    """block_rows / chunk_rows are in PACKED rows (pack samples per row)."""
    B, D = x.shape
    p = pack

    # ---- fold BN (eval mode, running stats) into the Linear layers ----
    w1, b1 = fold_bn_into_linear(params["w1"], params["b1"], params["gamma1"],
                                 params["beta1"], params["rmean1"], params["rvar1"])
    w2, b2 = fold_bn_into_linear(params["w2"], params["b2"], params["gamma2"],
                                 params["beta2"], params["rmean2"], params["rvar2"])
    w3, b3 = fold_bn_into_linear(params["w3"], params["b3"], params["gamma3"],
                                 params["beta3"], params["rmean3"], params["rvar3"])
    w4, b4 = params["w4"], params["b4"]

    # ---- pack p samples per kernel row (free row-major reshape) ----
    B_pad = _round_up(B, p)
    if B_pad != B:                                 # only pads tiny tails
        x = jnp.pad(x, ((0, B_pad - B), (0, 0)))
    xp = x.reshape(B_pad // p, p * D)
    Bp = xp.shape[0]
    Bp_pad = _round_up(Bp, 8)
    if Bp_pad != Bp:
        xp = jnp.pad(xp, ((0, Bp_pad - Bp), (0, 0)))

    # ---- block-diagonal folded weights in the MXU compute dtype ----
    w1c = _block_diag(w1, p).astype(compute_dtype)
    w2c = _block_diag(w2, p).astype(compute_dtype)
    w3c = _block_diag(w3, p).astype(compute_dtype)
    w4c = _block_diag(w4, p).astype(compute_dtype)
    b1t = jnp.tile(b1, (1, p)).astype(jnp.float32)
    b2t = jnp.tile(b2, (1, p)).astype(jnp.float32)
    b3t = jnp.tile(b3, (1, p)).astype(jnp.float32)
    b4t = jnp.tile(b4, (1, p)).astype(jnp.float32)

    # ---- batch tiling over packed rows ----
    CHUNK = _round_up(max(8, min(chunk_rows, Bp_pad)), 8)
    half = -(-Bp_pad // 2)                # aim for >=2 grid steps (v7x megacore)
    TB = min(block_rows, _round_up(half, CHUNK))
    TB = max(CHUNK, (TB // CHUNK) * CHUNK)
    n_chunks = TB // CHUNK
    if n_chunks > 8:                      # keep n_chunks a multiple of 8
        n_chunks = (n_chunks // 8) * 8
        TB = n_chunks * CHUNK
    grid = (pl.cdiv(Bp_pad, TB),)

    kernel = functools.partial(mlp_kernel, chunk=CHUNK, n_chunks=n_chunks,
                               compute_dtype=compute_dtype)

    const = lambda i: (0, 0)                       # weights resident across steps
    in_specs = [
        pl.BlockSpec((TB, p * D), lambda i: (i, 0)),   # x streamed over batch
        pl.BlockSpec(w1c.shape, const), pl.BlockSpec(b1t.shape, const),
        pl.BlockSpec(w2c.shape, const), pl.BlockSpec(b2t.shape, const),
        pl.BlockSpec(w3c.shape, const), pl.BlockSpec(b3t.shape, const),
        pl.BlockSpec(w4c.shape, const), pl.BlockSpec(b4t.shape, const),
    ]
    out_specs = pl.BlockSpec((TB, p), lambda i: (i, 0))

    out = pl.pallas_call(
        kernel,
        out_shape=jax.ShapeDtypeStruct((Bp_pad, p), jnp.float32),
        grid=grid,
        in_specs=in_specs,
        out_specs=out_specs,
        compiler_params=pltpu.CompilerParams(
            dimension_semantics=("parallel",),     # batch shards across TCs on v7x
            vmem_limit_bytes=32 * 1024 * 1024,     # safe on v5e/v6e/v7x, >> usage
        ),
    )(xp, w1c, b1t, w2c, b2t, w3c, b3t, w4c, b4t)

    # (Bp_pad, p) row-major -> flat sample order -> (B, 1)
    return out.reshape(-1)[:B].reshape(B, 1)


def init_params(input_size, key):
    """Deterministic parameter init mirroring the module's shapes."""
    ks = jax.random.split(key, 16)
    dims = [(input_size, 64), (64, 32), (32, 16), (16, 1)]
    params = {}
    for li, (din, dout) in enumerate(dims, start=1):
        bound = 1.0 / (din ** 0.5)
        params[f"w{li}"] = jax.random.uniform(ks[2 * li - 2], (din, dout),
                                              jnp.float32, -bound, bound)
        params[f"b{li}"] = jax.random.uniform(ks[2 * li - 1], (1, dout),
                                              jnp.float32, -bound, bound)
    bn_key = jax.random.split(key, 3)
    for bi, feat in enumerate([64, 32, 16], start=1):
        kk = jax.random.split(bn_key[bi - 1], 4)
        params[f"gamma{bi}"] = 1.0 + 0.1 * jax.random.normal(kk[0], (1, feat), jnp.float32)
        params[f"beta{bi}"] = 0.1 * jax.random.normal(kk[1], (1, feat), jnp.float32)
        params[f"rmean{bi}"] = 0.05 * jax.random.normal(kk[2], (1, feat), jnp.float32)
        params[f"rvar{bi}"] = 1.0 + 0.1 * jax.random.uniform(kk[3], (1, feat), jnp.float32)
    return params


def mlp_reference(x, params, eps=1e-5):
    """Plain-JAX reference: Linear -> BN(running stats) -> ReLU chain, eval mode."""
    def bn(h, i):
        scale = params[f"gamma{i}"] * lax.rsqrt(params[f"rvar{i}"] + eps)
        return (h - params[f"rmean{i}"]) * scale + params[f"beta{i}"]
    h = jnp.maximum(bn(x @ params["w1"] + params["b1"], 1), 0.0)
    h = jnp.maximum(bn(h @ params["w2"] + params["b2"], 2), 0.0)
    h = jnp.maximum(bn(h @ params["w3"] + params["b3"], 3), 0.0)
    return h @ params["w4"] + params["b4"]


if __name__ == "__main__":
    key = jax.random.PRNGKey(0)
    k_x, k_p = jax.random.split(key)

    # Small shapes consistent with the module (tabular rows of 32 features).
    batch, input_size = 64, 32
    x = jax.random.normal(k_x, (batch, input_size), jnp.float32)
    params = init_params(input_size, k_p)
    ref = mlp_reference(x, params)

    # f32 MXU path: tight check of the fused kernel semantics.
    out_f32 = mlp_forward(x, params, compute_dtype=jnp.float32)
    jax.block_until_ready(out_f32)
    assert out_f32.shape == (batch, 1)
    assert jnp.allclose(out_f32, ref, atol=1e-4, rtol=1e-4), \
        float(jnp.max(jnp.abs(out_f32 - ref)))

    # Default bf16 MXU path: looser tolerance (bf16 weights / bf16 x chunks).
    out_bf16 = mlp_forward(x, params)
    jax.block_until_ready(out_bf16)
    assert out_bf16.shape == (batch, 1)
    assert jnp.allclose(out_bf16, ref, atol=5e-2, rtol=5e-2), \
        float(jnp.max(jnp.abs(out_bf16 - ref)))

    # Larger batch: multi-block grid + unrolled inner chunk-loop path.
    big_batch = 4096
    xb = jax.random.normal(jax.random.PRNGKey(1), (big_batch, input_size), jnp.float32)
    ref_b = mlp_reference(xb, params)
    out_b = mlp_forward(xb, params, block_rows=256, chunk_rows=64)
    jax.block_until_ready(out_b)
    assert out_b.shape == (big_batch, 1)
    assert jnp.allclose(out_b, ref_b, atol=5e-2, rtol=5e-2), \
        float(jnp.max(jnp.abs(out_b - ref_b)))

    print("KERNEL_OK")
</pallas_src>

<mosaic_0001>
module attributes {stable_mosaic.version = 11 : i64} {
  func.func @mlp_kernel(%arg0: i32, %arg1: memref<16x128xf32, #tpu.memory_space<vmem>>, %arg2: memref<128x256xf32, #tpu.memory_space<vmem>>, %arg3: memref<1x256xf32, #tpu.memory_space<vmem>>, %arg4: memref<256x128xf32, #tpu.memory_space<vmem>>, %arg5: memref<1x128xf32, #tpu.memory_space<vmem>>, %arg6: memref<128x64xf32, #tpu.memory_space<vmem>>, %arg7: memref<1x64xf32, #tpu.memory_space<vmem>>, %arg8: memref<64x4xf32, #tpu.memory_space<vmem>>, %arg9: memref<1x4xf32, #tpu.memory_space<vmem>>, %arg10: memref<16x4xf32, #tpu.memory_space<vmem>>) attributes {dimension_semantics = [#tpu.dimension_semantics<parallel>], iteration_bounds = array<i64: 1>, scalar_prefetch = 0 : i64, scratch_operands = 0 : i64, tpu.core_type = #tpu.core_type<tc>, window_params = [{transform_indices = @transform_0, window_bounds = array<i64: 16, 128>}, {pipeline_mode = #tpu.pipeline_mode<synchronous>, transform_indices = @transform_1, window_bounds = array<i64: 128, 256>}, {pipeline_mode = #tpu.pipeline_mode<synchronous>, transform_indices = @transform_2, window_bounds = array<i64: 1, 256>}, {pipeline_mode = #tpu.pipeline_mode<synchronous>, transform_indices = @transform_3, window_bounds = array<i64: 256, 128>}, {pipeline_mode = #tpu.pipeline_mode<synchronous>, transform_indices = @transform_4, window_bounds = array<i64: 1, 128>}, {pipeline_mode = #tpu.pipeline_mode<synchronous>, transform_indices = @transform_5, window_bounds = array<i64: 128, 64>}, {pipeline_mode = #tpu.pipeline_mode<synchronous>, transform_indices = @transform_6, window_bounds = array<i64: 1, 64>}, {pipeline_mode = #tpu.pipeline_mode<synchronous>, transform_indices = @transform_7, window_bounds = array<i64: 64, 4>}, {pipeline_mode = #tpu.pipeline_mode<synchronous>, transform_indices = @transform_8, window_bounds = array<i64: 1, 4>}, {transform_indices = @transform_9, window_bounds = array<i64: 16, 4>}]} {
    %c0 = arith.constant 0 : index
    %c0_0 = arith.constant 0 : index
    %0 = vector.load %arg3[%c0, %c0_0] : memref<1x256xf32, #tpu.memory_space<vmem>>, vector<1x256xf32>
    %c0_1 = arith.constant 0 : index
    %c0_2 = arith.constant 0 : index
    %1 = vector.load %arg5[%c0_1, %c0_2] : memref<1x128xf32, #tpu.memory_space<vmem>>, vector<1x128xf32>
    %c0_3 = arith.constant 0 : index
    %c0_4 = arith.constant 0 : index
    %2 = vector.load %arg7[%c0_3, %c0_4] : memref<1x64xf32, #tpu.memory_space<vmem>>, vector<1x64xf32>
    %c0_5 = arith.constant 0 : index
    %c0_6 = arith.constant 0 : index
    %3 = vector.load %arg9[%c0_5, %c0_6] : memref<1x4xf32, #tpu.memory_space<vmem>>, vector<1x4xf32>
    %c0_i32 = arith.constant 0 : i32
    %c16_i32 = arith.constant 16 : i32
    %4 = arith.muli %c0_i32, %c16_i32 : i32
    %c0_i32_7 = arith.constant 0 : i32
    %5 = arith.addi %4, %c0_i32_7 : i32
    %6 = tpu.assume_multiple %5, 16 : i32
    %7 = arith.index_cast %6 : i32 to index
    %c0_8 = arith.constant 0 : index
    %8 = vector.load %arg1[%7, %c0_8] : memref<16x128xf32, #tpu.memory_space<vmem>>, vector<16x128xf32>
    %c0_9 = arith.constant 0 : index
    %c0_10 = arith.constant 0 : index
    %9 = vector.load %arg2[%c0_9, %c0_10] : memref<128x256xf32, #tpu.memory_space<vmem>>, vector<128x256xf32>
    %cst = arith.constant dense<0.000000e+00> : vector<16x256xf32>
    %10 = tpu.matmul %8, %9, %cst {dimension_numbers = #tpu.dot_dimension_numbers<[1], [0], [0], [1], [0, 0, 1, 1], [], []>} : vector<16x128xf32>, vector<128x256xf32>, vector<16x256xf32> -> vector<16x256xf32>
    %11 = vector.broadcast %0 : vector<1x256xf32> to vector<16x256xf32>
    %12 = arith.addf %10, %11 : vector<16x256xf32>
    %cst_11 = arith.constant 0.000000e+00 : f32
    %13 = vector.broadcast %cst_11 : f32 to vector<16x256xf32>
    %14 = arith.maximumf %12, %13 : vector<16x256xf32>
    %c0_12 = arith.constant 0 : index
    %c0_13 = arith.constant 0 : index
    %15 = vector.load %arg4[%c0_12, %c0_13] : memref<256x128xf32, #tpu.memory_space<vmem>>, vector<256x128xf32>
    %cst_14 = arith.constant dense<0.000000e+00> : vector<16x128xf32>
    %16 = tpu.matmul %14, %15, %cst_14 {dimension_numbers = #tpu.dot_dimension_numbers<[1], [0], [0], [1], [0, 0, 1, 1], [], []>} : vector<16x256xf32>, vector<256x128xf32>, vector<16x128xf32> -> vector<16x128xf32>
    %17 = vector.broadcast %1 : vector<1x128xf32> to vector<16x128xf32>
    %18 = arith.addf %16, %17 : vector<16x128xf32>
    %cst_15 = arith.constant 0.000000e+00 : f32
    %19 = vector.broadcast %cst_15 : f32 to vector<16x128xf32>
    %20 = arith.maximumf %18, %19 : vector<16x128xf32>
    %c0_16 = arith.constant 0 : index
    %c0_17 = arith.constant 0 : index
    %21 = vector.load %arg6[%c0_16, %c0_17] : memref<128x64xf32, #tpu.memory_space<vmem>>, vector<128x64xf32>
    %cst_18 = arith.constant dense<0.000000e+00> : vector<16x64xf32>
    %22 = tpu.matmul %20, %21, %cst_18 {dimension_numbers = #tpu.dot_dimension_numbers<[1], [0], [0], [1], [0, 0, 1, 1], [], []>} : vector<16x128xf32>, vector<128x64xf32>, vector<16x64xf32> -> vector<16x64xf32>
    %23 = vector.broadcast %2 : vector<1x64xf32> to vector<16x64xf32>
    %24 = arith.addf %22, %23 : vector<16x64xf32>
    %cst_19 = arith.constant 0.000000e+00 : f32
    %25 = vector.broadcast %cst_19 : f32 to vector<16x64xf32>
    %26 = arith.maximumf %24, %25 : vector<16x64xf32>
    %c0_20 = arith.constant 0 : index
    %c0_21 = arith.constant 0 : index
    %27 = vector.load %arg8[%c0_20, %c0_21] : memref<64x4xf32, #tpu.memory_space<vmem>>, vector<64x4xf32>
    %cst_22 = arith.constant dense<0.000000e+00> : vector<16x4xf32>
    %28 = tpu.matmul %26, %27, %cst_22 {dimension_numbers = #tpu.dot_dimension_numbers<[1], [0], [0], [1], [0, 0, 1, 1], [], []>} : vector<16x64xf32>, vector<64x4xf32>, vector<16x4xf32> -> vector<16x4xf32>
    %29 = vector.broadcast %3 : vector<1x4xf32> to vector<16x4xf32>
    %30 = arith.addf %28, %29 : vector<16x4xf32>
    %31 = arith.index_cast %6 : i32 to index
    %c0_23 = arith.constant 0 : index
    %32 = vector.load %arg10[%31, %c0_23] : memref<16x4xf32, #tpu.memory_space<vmem>>, vector<16x4xf32>
    tpu.vector_store %arg10[%31, %c0_23], %30 {strides = array<i32>} : memref<16x4xf32, #tpu.memory_space<vmem>>, vector<16x4xf32>,
    %c1_i32 = arith.constant 1 : i32
    return
  }
  func.func @transform_0(%arg0: i32) -> (i32, i32) {
    %c0_i32 = arith.constant 0 : i32
    %c0_i32_0 = arith.constant 0 : i32
    return %arg0, %c0_i32 : i32, i32
  }
  func.func @transform_1(%arg0: i32) -> (i32, i32) {
    %c0_i32 = arith.constant 0 : i32
    %c0_i32_0 = arith.constant 0 : i32
    %c0_i32_1 = arith.constant 0 : i32
    return %c0_i32, %c0_i32_0 : i32, i32
  }
  func.func @transform_2(%arg0: i32) -> (i32, i32) {
    %c0_i32 = arith.constant 0 : i32
    %c0_i32_0 = arith.constant 0 : i32
    %c0_i32_1 = arith.constant 0 : i32
    return %c0_i32, %c0_i32_0 : i32, i32
  }
  func.func @transform_3(%arg0: i32) -> (i32, i32) {
    %c0_i32 = arith.constant 0 : i32
    %c0_i32_0 = arith.constant 0 : i32
    %c0_i32_1 = arith.constant 0 : i32
    return %c0_i32, %c0_i32_0 : i32, i32
  }
  func.func @transform_4(%arg0: i32) -> (i32, i32) {
    %c0_i32 = arith.constant 0 : i32
    %c0_i32_0 = arith.constant 0 : i32
    %c0_i32_1 = arith.constant 0 : i32
    return %c0_i32, %c0_i32_0 : i32, i32
  }
  func.func @transform_5(%arg0: i32) -> (i32, i32) {
    %c0_i32 = arith.constant 0 : i32
    %c0_i32_0 = arith.constant 0 : i32
    %c0_i32_1 = arith.constant 0 : i32
    return %c0_i32, %c0_i32_0 : i32, i32
  }
  func.func @transform_6(%arg0: i32) -> (i32, i32) {
    %c0_i32 = arith.constant 0 : i32
    %c0_i32_0 = arith.constant 0 : i32
    %c0_i32_1 = arith.constant 0 : i32
    return %c0_i32, %c0_i32_0 : i32, i32
  }
  func.func @transform_7(%arg0: i32) -> (i32, i32) {
    %c0_i32 = arith.constant 0 : i32
    %c0_i32_0 = arith.constant 0 : i32
    %c0_i32_1 = arith.constant 0 : i32
    return %c0_i32, %c0_i32_0 : i32, i32
  }
  func.func @transform_8(%arg0: i32) -> (i32, i32) {
    %c0_i32 = arith.constant 0 : i32
    %c0_i32_0 = arith.constant 0 : i32
    %c0_i32_1 = arith.constant 0 : i32
    return %c0_i32, %c0_i32_0 : i32, i32
  }
  func.func @transform_9(%arg0: i32) -> (i32, i32) {
    %c0_i32 = arith.constant 0 : i32
    %c0_i32_0 = arith.constant 0 : i32
    return %arg0, %c0_i32 : i32, i32
  }
}

</mosaic_0001>

<llo_original>
// kernel: tpu_custom_call.1
$region0: #{tpu_custom_call.1}
  #allocation0 [shape = 'u32[]', space=smem, size = 0x4, offset = 0x4, fixed_abs, tag = 'smem constant byte address 0x4 - core index']
  #allocation1 [shape = 'u32[72,128]{1,0:T(1,128)}', space=vmem, size = 0x9000, scoped, tag = 'internal scratch']
  %s0 = inlined_call_operand.vmem [shape: f32[16,128], index: 0, kind: input, shape index: {}]
  %s1 = inlined_call_operand.hbm [shape: f32[128,256], index: 1, kind: input, shape index: {}]
  %s2 = inlined_call_operand.vmem [shape: f32[1,256], index: 2, kind: input, shape index: {}]
  %s3 = inlined_call_operand.hbm [shape: f32[256,128], index: 3, kind: input, shape index: {}]
  %s4 = inlined_call_operand.vmem [shape: f32[1,128], index: 4, kind: input, shape index: {}]
  %s5 = inlined_call_operand.vmem [shape: f32[128,64], index: 5, kind: input, shape index: {}]
  %s6 = inlined_call_operand.vmem [shape: f32[1,64], index: 6, kind: input, shape index: {}]
  %s7 = inlined_call_operand.vmem [shape: f32[64,4], index: 7, kind: input, shape index: {}]
  %s8 = inlined_call_operand.vmem [shape: f32[1,4], index: 8, kind: input, shape index: {}]
  %s9 = inlined_call_operand.vmem [shape: f32[16,4], index: 9, kind: output, shape index: {}]
  %s10 = sld [smem:[#allocation0]]
  $region54: #{tpu_custom_call.1} parent=0
    _
  %s12 = ssub.s32 1, %s10
  %s13 = scalar_select 0, %s12, %s10
  $region1: #{tpu_custom_call.1} parent=0
    #allocation2 [shape = 'u8[131072]{0}', space=vmem, size = 0x20000, scoped, tag = 'input window, operand 1, single buffered']
    #allocation3 [shape = 's32[1]{0}', space=sflag, size = 0x4, scoped, tag = 'scoped memory for tpu_custom_call.1']
    #allocation4 [shape = 'u8[131072]{0}', space=vmem, size = 0x20000, scoped, tag = 'input window, operand 3, single buffered']
    #allocation5 [shape = 's32[1]{0}', space=sflag, size = 0x4, scoped, tag = 'scoped memory for tpu_custom_call.1']
    %14 = vsyncpa [#allocation3], 0
    %15 = vsyncpa [#allocation5], 0
    // Predicated region
    $region2: #{tpu_custom_call.1} parent=1 // pred_check
      _
    $region3: #{tpu_custom_call.1} parent=1 // pred_check_branch
      %17 = sbr.rel (0) target = $region5
    $region4: #{tpu_custom_call.1} parent=1 // pred_region
      _
    $region5: #{tpu_custom_call.1} parent=1 // pred_fallthru
      _
    // Predicated region
    $region6: #{tpu_custom_call.1} parent=1 // pred_check
      _
    $region7: #{tpu_custom_call.1} parent=1 // pred_check_branch
      %19 = sbr.rel (0) target = $region9
    $region8: #{tpu_custom_call.1} parent=1 // pred_region
      %21 = vsyncadd [#allocation3], 0
      %s22 = sshll.u32 %s1, 4
      %s23 = int_to_ptr.hbm [resolvable:$true] %s22
      %s24 = sshll.u32 [#allocation2], 4
      %s25 = int_to_ptr.vmem [resolvable:$true] %s24
      %30 = dma.hbm_to_vmem [thread:$0]  %s23, 4096, %s25, [#allocation3], 256, 256, 16
    $region9: #{tpu_custom_call.1} parent=1 // pred_fallthru
      _
    // Predicated region
    $region10: #{tpu_custom_call.1} parent=1 // pred_check
      _
    $region11: #{tpu_custom_call.1} parent=1 // pred_check_branch
      %32 = sbr.rel (0) target = $region13
    $region12: #{tpu_custom_call.1} parent=1 // pred_region
      _
    $region13: #{tpu_custom_call.1} parent=1 // pred_fallthru
      _
    // Predicated region
    $region14: #{tpu_custom_call.1} parent=1 // pred_check
      _
    $region15: #{tpu_custom_call.1} parent=1 // pred_check_branch
      %34 = sbr.rel (0) target = $region17
    $region16: #{tpu_custom_call.1} parent=1 // pred_region
      %36 = vsyncadd [#allocation5], 0
      %s37 = sshll.u32 %s3, 4
      %s38 = int_to_ptr.hbm [resolvable:$true] %s37
      %s39 = sshll.u32 [#allocation4], 4
      %s40 = int_to_ptr.vmem [resolvable:$true] %s39
      %45 = dma.hbm_to_vmem [thread:$0]  %s38, 4096, %s40, [#allocation5], 128, 128, 8
    $region17: #{tpu_custom_call.1} parent=1 // pred_fallthru
      _
    // Predicated region
    $region18: #{tpu_custom_call.1} parent=1 // pred_check
      _
    $region19: #{tpu_custom_call.1} parent=1 // pred_check_branch
      %47 = sbr.rel (0) target = $region21
    $region20: #{tpu_custom_call.1} parent=1 // pred_region
      _
    $region21: #{tpu_custom_call.1} parent=1 // pred_fallthru
      _
    // Predicated region
    $region22: #{tpu_custom_call.1} parent=1 // pred_check
      _
    $region23: #{tpu_custom_call.1} parent=1 // pred_check_branch
      %49 = sbr.rel (0) target = $region25
    $region24: #{tpu_custom_call.1} parent=1 // pred_region
      _
    $region25: #{tpu_custom_call.1} parent=1 // pred_fallthru
      _
    // Predicated region
    $region26: #{tpu_custom_call.1} parent=1 // pred_check
      _
    $region27: #{tpu_custom_call.1} parent=1 // pred_check_branch
      %51 = sbr.rel (0) target = $region29
    $region28: #{tpu_custom_call.1} parent=1 // pred_region
      _
    $region29: #{tpu_custom_call.1} parent=1 // pred_fallthru
      _
    // Predicated region
    $region30: #{tpu_custom_call.1} parent=1 // pred_check
      _
    $region31: #{tpu_custom_call.1} parent=1 // pred_check_branch
      %53 = sbr.rel (0) target = $region33
    $region32: #{tpu_custom_call.1} parent=1 // pred_region
      _
    $region33: #{tpu_custom_call.1} parent=1 // pred_fallthru
      _
    // Predicated region
    $region34: #{tpu_custom_call.1} parent=1 // pred_check
      _
    $region35: #{tpu_custom_call.1} parent=1 // pred_check_branch
      %55 = sbr.rel (0) target = $region37
    $region36: #{tpu_custom_call.1} parent=1 // pred_region
      _
    $region37: #{tpu_custom_call.1} parent=1 // pred_fallthru
      _
    // Predicated region
    $region38: #{tpu_custom_call.1} parent=1 // pred_check
      _
    $region39: #{tpu_custom_call.1} parent=1 // pred_check_branch
      %57 = sbr.rel (0) target = $region41
    $region40: #{tpu_custom_call.1} parent=1 // pred_region
      %59 = dma.done [#allocation3], 4096
    $region41: #{tpu_custom_call.1} parent=1 // pred_fallthru
      _
    // Predicated region
    $region42: #{tpu_custom_call.1} parent=1 // pred_check
      _
    $region43: #{tpu_custom_call.1} parent=1 // pred_check_branch
      %61 = sbr.rel (0) target = $region45
    $region44: #{tpu_custom_call.1} parent=1 // pred_region
      %63 = dma.done [#allocation5], 4096
    $region45: #{tpu_custom_call.1} parent=1 // pred_fallthru
      _
    %v64 = vld [vmem:[%s2] sm:$0x3]
    %v65 = vld [vmem:[%s4] sm:$0x1]
    %v66 = vld [vmem:[%s6] sm:$0x1]
    %v67 = vld [vmem:[%s8] sm:$0x1]
    %v68 = vld [vmem:[%s0] sm:$0xff]
    %v69 = vld [vmem:[%s0 + $0x8] sm:$0xff]
    %v70 = vld [vmem:[#allocation2] sm:$0xff]
    %v71 = vld [vmem:[#allocation2 + $0x8] sm:$0xff]
    %v72 = vld [vmem:[#allocation2 + $0x10] sm:$0xff]
    %v73 = vld [vmem:[#allocation2 + $0x18] sm:$0xff]
    %v74 = vld [vmem:[#allocation2 + $0x20] sm:$0xff]
    %v75 = vld [vmem:[#allocation2 + $0x28] sm:$0xff]
    %v76 = vld [vmem:[#allocation2 + $0x30] sm:$0xff]
    %v77 = vld [vmem:[#allocation2 + $0x38] sm:$0xff]
    %v78 = vld [vmem:[#allocation2 + $0x40] sm:$0xff]
    %v79 = vld [vmem:[#allocation2 + $0x48] sm:$0xff]
    %v80 = vld [vmem:[#allocation2 + $0x50] sm:$0xff]
    %v81 = vld [vmem:[#allocation2 + $0x58] sm:$0xff]
    %v82 = vld [vmem:[#allocation2 + $0x60] sm:$0xff]
    %v83 = vld [vmem:[#allocation2 + $0x68] sm:$0xff]
    %v84 = vld [vmem:[#allocation2 + $0x70] sm:$0xff]
    %v85 = vld [vmem:[#allocation2 + $0x78] sm:$0xff]
    %v86 = vld [vmem:[#allocation2 + $0x80] sm:$0xff]
    %v87 = vld [vmem:[#allocation2 + $0x88] sm:$0xff]
    %v88 = vld [vmem:[#allocation2 + $0x90] sm:$0xff]
    %v89 = vld [vmem:[#allocation2 + $0x98] sm:$0xff]
    %v90 = vld [vmem:[#allocation2 + $0xa0] sm:$0xff]
    %v91 = vld [vmem:[#allocation2 + $0xa8] sm:$0xff]
    %v92 = vld [vmem:[#allocation2 + $0xb0] sm:$0xff]
    %v93 = vld [vmem:[#allocation2 + $0xb8] sm:$0xff]
    %v94 = vld [vmem:[#allocation2 + $0xc0] sm:$0xff]
    %v95 = vld [vmem:[#allocation2 + $0xc8] sm:$0xff]
    %v96 = vld [vmem:[#allocation2 + $0xd0] sm:$0xff]
    %v97 = vld [vmem:[#allocation2 + $0xd8] sm:$0xff]
    %v98 = vld [vmem:[#allocation2 + $0xe0] sm:$0xff]
    %v99 = vld [vmem:[#allocation2 + $0xe8] sm:$0xff]
    %v100 = vld [vmem:[#allocation2 + $0xf0] sm:$0xff]
    %v101 = vld [vmem:[#allocation2 + $0xf8] sm:$0xff]
    %v103 = vperm.slane %v64, 0
    %v104 = vperm.slane %v64, 1
    %107 = vmatpush.msra.mxu0 %v100
    %108 = vmatpush.msra.mxu0 %v98
    %109 = vmatpush.msra.mxu0 %v96
    %110 = vmatpush.msra.mxu0 %v94
    %111 = vmatpush.msra.mxu0 %v92
    %112 = vmatpush.msra.mxu0 %v90
    %113 = vmatpush.msra.mxu0 %v88
    %114 = vmatpush.msra.mxu0 %v86
    %115 = vmatpush.msra.mxu0 %v84
    %116 = vmatpush.msra.mxu0 %v82
    %117 = vmatpush.msra.mxu0 %v80
    %118 = vmatpush.msra.mxu0 %v78
    %119 = vmatpush.msra.mxu0 %v76
    %120 = vmatpush.msra.mxu0 %v74
    %121 = vmatpush.msra.mxu0 %v72
    %122 = vmatpush.msra.mxu0 %v70
    %123 = vmatmul.f32.gmra.mxu0 %v68
    %v124 = vpop.f32.mrf.mxu0
    %v125 = vadd.f32 %v103, %v124
    %126 = vmatmul.f32.gmra.mxu0 %v69
    %v127 = vpop.f32.mrf.mxu0
    %v128 = vadd.f32 %v103, %v127
    %129 = vdwg.mxu0
    %130 = vmatpush.msra.mxu0 %v101
    %131 = vmatpush.msra.mxu0 %v99
    %132 = vmatpush.msra.mxu0 %v97
    %133 = vmatpush.msra.mxu0 %v95
    %134 = vmatpush.msra.mxu0 %v93
    %135 = vmatpush.msra.mxu0 %v91
    %136 = vmatpush.msra.mxu0 %v89
    %137 = vmatpush.msra.mxu0 %v87
    %138 = vmatpush.msra.mxu0 %v85
    %139 = vmatpush.msra.mxu0 %v83
    %140 = vmatpush.msra.mxu0 %v81
    %141 = vmatpush.msra.mxu0 %v79
    %142 = vmatpush.msra.mxu0 %v77
    %143 = vmatpush.msra.mxu0 %v75
    %144 = vmatpush.msra.mxu0 %v73
    %145 = vmatpush.msra.mxu0 %v71
    %146 = vmatmul.f32.gmra.mxu0 %v68
    %v147 = vpop.f32.mrf.mxu0
    %v148 = vadd.f32 %v104, %v147
    %149 = vmatmul.f32.gmra.mxu0 %v69
    %v150 = vpop.f32.mrf.mxu0
    %v151 = vadd.f32 %v104, %v150
    %152 = vdwg.mxu0
    %v153 = vmax.f32 %v125, 0.0
    %v154 = vmax.f32 %v148, 0.0
    %v155 = vmax.f32 %v128, 0.0
    %v156 = vmax.f32 %v151, 0.0
    %v157 = vld [vmem:[#allocation4] sm:$0xff]
    %v158 = vld [vmem:[#allocation4 + $0x8] sm:$0xff]
    %v159 = vld [vmem:[#allocation4 + $0x10] sm:$0xff]
    %v160 = vld [vmem:[#allocation4 + $0x18] sm:$0xff]
    %v161 = vld [vmem:[#allocation4 + $0x20] sm:$0xff]
    %v162 = vld [vmem:[#allocation4 + $0x28] sm:$0xff]
    %v163 = vld [vmem:[#allocation4 + $0x30] sm:$0xff]
    %v164 = vld [vmem:[#allocation4 + $0x38] sm:$0xff]
    %v165 = vld [vmem:[#allocation4 + $0x40] sm:$0xff]
    %v166 = vld [vmem:[#allocation4 + $0x48] sm:$0xff]
    %v167 = vld [vmem:[#allocation4 + $0x50] sm:$0xff]
    %v168 = vld [vmem:[#allocation4 + $0x58] sm:$0xff]
    %v169 = vld [vmem:[#allocation4 + $0x60] sm:$0xff]
    %v170 = vld [vmem:[#allocation4 + $0x68] sm:$0xff]
    %v171 = vld [vmem:[#allocation4 + $0x70] sm:$0xff]
    %v172 = vld [vmem:[#allocation4 + $0x78] sm:$0xff]
    %v173 = vld [vmem:[#allocation4 + $0x80] sm:$0xff]
    %v174 = vld [vmem:[#allocation4 + $0x88] sm:$0xff]
    %v175 = vld [vmem:[#allocation4 + $0x90] sm:$0xff]
    %v176 = vld [vmem:[#allocation4 + $0x98] sm:$0xff]
    %v177 = vld [vmem:[#allocation4 + $0xa0] sm:$0xff]
    %v178 = vld [vmem:[#allocation4 + $0xa8] sm:$0xff]
    %v179 = vld [vmem:[#allocation4 + $0xb0] sm:$0xff]
    %v180 = vld [vmem:[#allocation4 + $0xb8] sm:$0xff]
    %v181 = vld [vmem:[#allocation4 + $0xc0] sm:$0xff]
    %v182 = vld [vmem:[#allocation4 + $0xc8] sm:$0xff]
    %v183 = vld [vmem:[#allocation4 + $0xd0] sm:$0xff]
    %v184 = vld [vmem:[#allocation4 + $0xd8] sm:$0xff]
    %v185 = vld [vmem:[#allocation4 + $0xe0] sm:$0xff]
    %v186 = vld [vmem:[#allocation4 + $0xe8] sm:$0xff]
    %v187 = vld [vmem:[#allocation4 + $0xf0] sm:$0xff]
    %v188 = vld [vmem:[#allocation4 + $0xf8] sm:$0xff]
    %v190 = vperm.slane %v65, 0
    %192 = vmatpush.msra.mxu0 %v172
    %193 = vmatpush.msra.mxu0 %v171
    %194 = vmatpush.msra.mxu0 %v170
    %195 = vmatpush.msra.mxu0 %v169
    %196 = vmatpush.msra.mxu0 %v168
    %197 = vmatpush.msra.mxu0 %v167
    %198 = vmatpush.msra.mxu0 %v166
    %199 = vmatpush.msra.mxu0 %v165
    %200 = vmatpush.msra.mxu0 %v164
    %201 = vmatpush.msra.mxu0 %v163
    %202 = vmatpush.msra.mxu0 %v162
    %203 = vmatpush.msra.mxu0 %v161
    %204 = vmatpush.msra.mxu0 %v160
    %205 = vmatpush.msra.mxu0 %v159
    %206 = vmatpush.msra.mxu0 %v158
    %207 = vmatpush.msra.mxu0 %v157
    %208 = vmatmul.f32.gmra.mxu0 %v153
    %v209 = vpop.f32.mrf.mxu0
    %v210 = vadd.f32 %v190, %v209
    %211 = vmatmul.f32.gmra.mxu0 %v155
    %v212 = vpop.f32.mrf.mxu0
    %v213 = vadd.f32 %v190, %v212
    %214 = vdwg.mxu0
    %215 = vmatpush.msra.mxu0 %v188
    %216 = vmatpush.msra.mxu0 %v187
    %217 = vmatpush.msra.mxu0 %v186
    %218 = vmatpush.msra.mxu0 %v185
    %219 = vmatpush.msra.mxu0 %v184
    %220 = vmatpush.msra.mxu0 %v183
    %221 = vmatpush.msra.mxu0 %v182
    %222 = vmatpush.msra.mxu0 %v181
    %223 = vmatpush.msra.mxu0 %v180
    %224 = vmatpush.msra.mxu0 %v179
    %225 = vmatpush.msra.mxu0 %v178
    %226 = vmatpush.msra.mxu0 %v177
    %227 = vmatpush.msra.mxu0 %v176
    %228 = vmatpush.msra.mxu0 %v175
    %229 = vmatpush.msra.mxu0 %v174
    %230 = vmatpush.msra.mxu0 %v173
    %231 = vmatmul.f32.gmra.mxu0 %v154
    %v232 = vpop.f32.mrf.mxu0
    %v233 = vadd.f32 %v210, %v232
    %234 = vmatmul.f32.gmra.mxu0 %v156
    %v235 = vpop.f32.mrf.mxu0
    %v236 = vadd.f32 %v213, %v235
    %237 = vdwg.mxu0
    %v238 = vmax.f32 %v233, 0.0
    %v239 = vmax.f32 %v236, 0.0
    %v240 = vld [vmem:[%s5] sm:$0xff]
    %v241 = vld [vmem:[%s5 + $0x8] sm:$0xff]
    %v242 = vld [vmem:[%s5 + $0x10] sm:$0xff]
    %v243 = vld [vmem:[%s5 + $0x18] sm:$0xff]
    %v244 = vld [vmem:[%s5 + $0x20] sm:$0xff]
    %v245 = vld [vmem:[%s5 + $0x28] sm:$0xff]
    %v246 = vld [vmem:[%s5 + $0x30] sm:$0xff]
    %v247 = vld [vmem:[%s5 + $0x38] sm:$0xff]
    %v248 = vld [vmem:[%s5 + $0x40] sm:$0xff]
    %v249 = vld [vmem:[%s5 + $0x48] sm:$0xff]
    %v250 = vld [vmem:[%s5 + $0x50] sm:$0xff]
    %v251 = vld [vmem:[%s5 + $0x58] sm:$0xff]
    %v252 = vld [vmem:[%s5 + $0x60] sm:$0xff]
    %v253 = vld [vmem:[%s5 + $0x68] sm:$0xff]
    %v254 = vld [vmem:[%s5 + $0x70] sm:$0xff]
    %v255 = vld [vmem:[%s5 + $0x78] sm:$0xff]
    %v257 = vperm.slane %v66, 0
    %259 = vmatpush.msra.mxu0 %v255
    %260 = vmatpush.msra.mxu0 %v254
    %261 = vmatpush.msra.mxu0 %v253
    %262 = vmatpush.msra.mxu0 %v252
    %263 = vmatpush.msra.mxu0 %v251
    %264 = vmatpush.msra.mxu0 %v250
    %265 = vmatpush.msra.mxu0 %v249
    %266 = vmatpush.msra.mxu0 %v248
    %267 = vmatpush.msra.mxu0 %v247
    %268 = vmatpush.msra.mxu0 %v246
    %269 = vmatpush.msra.mxu0 %v245
    %270 = vmatpush.msra.mxu0 %v244
    %271 = vmatpush.msra.mxu0 %v243
    %272 = vmatpush.msra.mxu0 %v242
    %273 = vmatpush.msra.mxu0 %v241
    %274 = vmatpush.msra.mxu0 %v240
    %275 = vmatmul.f32.gmra.mxu0 %v238
    %v276 = vpop.f32.mrf.mxu0
    %v277 = vadd.f32 %v257, %v276
    %278 = vmatmul.f32.gmra.mxu0 %v239
    %v279 = vpop.f32.mrf.mxu0
    %v280 = vadd.f32 %v257, %v279
    %281 = vdwg.mxu0
    %v282 = vmax.f32 %v277, 0.0
    %v283 = vmax.f32 %v280, 0.0
    %v284 = vld [vmem:[%s7] sm:$0xff]
    %v285 = vld [vmem:[%s7 + $0x8] sm:$0xff]
    %v286 = vld [vmem:[%s7 + $0x10] sm:$0xff]
    %v287 = vld [vmem:[%s7 + $0x18] sm:$0xff]
    %v288 = vld [vmem:[%s7 + $0x20] sm:$0xff]
    %v289 = vld [vmem:[%s7 + $0x28] sm:$0xff]
    %v290 = vld [vmem:[%s7 + $0x30] sm:$0xff]
    %v291 = vld [vmem:[%s7 + $0x38] sm:$0xff]
    %v293 = vperm.slane %v67, 0
    %vm295 = vcmask 523264
    %v297 = vsel %vm295, %v282, 0
    %v300 = vsel %vm295, %v283, 0
    %302 = vmatpush.msra.mxu0 0.0
    %303 = vmatpush.msra.mxu0 0.0
    %304 = vmatpush.msra.mxu0 0.0
    %305 = vmatpush.msra.mxu0 0.0
    %306 = vmatpush.msra.mxu0 0.0
    %307 = vmatpush.msra.mxu0 0.0
    %308 = vmatpush.msra.mxu0 0.0
    %309 = vmatpush.msra.mxu0 0.0
    %310 = vmatpush.msra.mxu0 %v291
    %311 = vmatpush.msra.mxu0 %v290
    %312 = vmatpush.msra.mxu0 %v289
    %313 = vmatpush.msra.mxu0 %v288
    %314 = vmatpush.msra.mxu0 %v287
    %315 = vmatpush.msra.mxu0 %v286
    %316 = vmatpush.msra.mxu0 %v285
    %317 = vmatpush.msra.mxu0 %v284
    %318 = vmatmul.f32.gmra.mxu0 %v297
    %v319 = vpop.f32.mrf.mxu0
    %v320 = vadd.f32 %v293, %v319
    %321 = vmatmul.f32.gmra.mxu0 %v300
    %v322 = vpop.f32.mrf.mxu0
    %v323 = vadd.f32 %v293, %v322
    %324 = vdwg.mxu0
    %vm325 = vcmask 31744
    %326 = vst.msk [vmem:[%s9] sm:$0xff] %vm325, %v320
    %327 = vst.msk [vmem:[%s9 + $0x8] sm:$0xff] %vm325, %v323
    // Predicated region
    $region46: #{tpu_custom_call.1} parent=1 // pred_check
      _
    $region47: #{tpu_custom_call.1} parent=1 // pred_check_branch
      %329 = sbr.rel (0) target = $region49
    $region48: #{tpu_custom_call.1} parent=1 // pred_region
      _
    $region49: #{tpu_custom_call.1} parent=1 // pred_fallthru
      _
    // Predicated region
    $region50: #{tpu_custom_call.1} parent=1 // pred_check
      _
    $region51: #{tpu_custom_call.1} parent=1 // pred_check_branch
      %331 = sbr.rel (0) target = $region53
    $region52: #{tpu_custom_call.1} parent=1 // pred_region
      _
    $region53: #{tpu_custom_call.1} parent=1 // pred_fallthru
      _
    %332 = vsyncpa [#allocation3], 1
    %333 = vsyncpa [#allocation5], 1

</llo_original>
